<compile_context>
chip_gen: v7x
topology: tpu7x:2x2x1
jax: 0.10.0
libtpu: 0.0.40
codegen_flags: <defaults>
</compile_context>

<pallas_src>
import jax
import jax.numpy as jnp
from jax.experimental import pallas as pl
from jax.experimental.pallas import tpu as pltpu

# Largest per-block data-tile size.  See header comment for the VMEM reasoning.
_MAX_BLOCK_BYTES = 3 << 20


def _make_hflip_kernel(w: int):
    """Kernel factory; `w` (image width, power of two) is baked in statically.

    Block layout: x_ref / o_ref are (B, L) with L = C*H*W (multiple of 128,
    W divides L); flags_ref is (B, 1) int32, nonzero => flip that row/sample.
    """
    assert w >= 1 and (w & (w - 1)) == 0, "width must be a power of two"

    def kernel(flags_ref, x_ref, o_ref):
        x = x_ref[...]                                  # (B, L)
        L = x.shape[-1]
        lane = jax.lax.broadcasted_iota(jnp.int32, x.shape, 1)

        # Reverse every aligned W-sized group of lanes: out[l] = x[l ^ (w-1)],
        # as a log2(w)-stage butterfly of XLU rotations + VPU selects.  Wrapped
        # roll elements are never selected: within each aligned 2k block, bit k
        # of the lane index picks the in-row direction, and W | L keeps groups
        # aligned after collapsing C and H into the lane axis.
        y = x
        k = 1
        while k < w:                                    # static log2(w) stages
            up = pltpu.roll(y, L - k, axis=1)           # up[l]   = y[(l + k) % L]
            down = pltpu.roll(y, k, axis=1)             # down[l] = y[(l - k) % L]
            y = jnp.where((lane & k) == 0, up, down)
            k *= 2

        # Per-row blend (flip vs passthrough).  Always computing the flip is
        # far below the HBM roofline, so the select costs no wall time and
        # lets one block carry many samples.
        flags = flags_ref[...]                          # (B, 1), broadcast over L
        o_ref[...] = jnp.where(flags != 0, y, x)

    return kernel


def _hflip_pallas(x2, flags, *, width):
    """x2: (N, L) lane-dense slab (L = C*H*W, multiple of 128).
    flags: (N,) int32/bool per-row flip decisions.  Returns (N, L)."""
    n, l = x2.shape
    itemsize = jnp.dtype(x2.dtype).itemsize

    # Sublane packing: 8 rows per vreg tile for 32-bit, 16 for bf16, 32 for i8.
    row_align = {4: 8, 2: 16, 1: 32}.get(itemsize, 8)

    # Rows per block: largest aligned count whose data tile fits the byte cap.
    row_bytes = l * itemsize
    max_rows = max(row_align,
                   (_MAX_BLOCK_BYTES // row_bytes) // row_align * row_align)

    n_pad = pl.cdiv(n, row_align) * row_align
    b = min(max_rows, n_pad)
    # Prefer >= 2 grid blocks so ("parallel",) can use both v7x TensorCores
    # (v5e/v6e have a single TC; harmless there).
    if pl.cdiv(n_pad, b) < 2 and n_pad >= 2 * row_align:
        b = max(row_align, (n_pad // 2) // row_align * row_align)
    n_grid = pl.cdiv(n_pad, b) * b                      # even grid, no edge masks

    if n_grid != n:
        x2 = jnp.pad(x2, ((0, n_grid - n), (0, 0)))
        flags = jnp.pad(flags, (0, n_grid - n))
    flags2 = flags.reshape(n_grid, 1).astype(jnp.int32)

    out = pl.pallas_call(
        _make_hflip_kernel(width),
        out_shape=jax.ShapeDtypeStruct((n_grid, l), x2.dtype),
        grid_spec=pl.GridSpec(
            grid=(n_grid // b,),
            in_specs=[
                pl.BlockSpec((b, 1), lambda i: (i, 0)),     # per-row flip flags
                pl.BlockSpec((b, l), lambda i: (i, 0)),     # data rows
            ],
            out_specs=pl.BlockSpec((b, l), lambda i: (i, 0)),
        ),
        # Reuse the input slab's HBM for the output (no second dataset-sized
        # allocation); XLA inserts a copy if the buffer cannot be donated.
        input_output_aliases={1: 0},
        compiler_params=pltpu.CompilerParams(
            dimension_semantics=("parallel",),
        ),
        cost_estimate=pl.CostEstimate(
            flops=0, transcendentals=0,
            bytes_accessed=2 * n_grid * l * itemsize),
    )(flags2, x2)
    return out[:n]


_hflip_pallas_jit = jax.jit(_hflip_pallas, static_argnames=("width",))


def cifar_random_horizontal_flip(data, key, p=0.5, usage="proposed", *,
                                 min_pallas_bytes=256 * 1024):
    """JAX/Pallas equivalent of CifarRandomHorizontalFlip.forward.

    data: (C, H, W) single image or (N, C, H, W) batch (flip decision drawn
          independently per sample).  CHW convention like PyTorch.
    key:  PRNG key replacing torch.rand(1) for the flip decision(s).
    """
    assert 0.0 <= p <= 1.0
    # 'proposed' (flip [:3] and [3:] separately, then concat) == flip all of W.
    del usage

    squeeze = data.ndim == 3
    if squeeze:
        data = data[None]
    N, C, H, W = data.shape
    L = C * H * W

    # Per-sample flip decision (replaces `torch.rand(1) < self.p`).
    flags = jax.random.uniform(key, (N,)) < p

    total_bytes = data.size * jnp.dtype(data.dtype).itemsize
    pallas_ok = (W & (W - 1)) == 0 and L % 128 == 0
    if (not pallas_ok) or total_bytes < min_pallas_bytes:
        # Tiny inputs (or non-CIFAR-like shapes): a fused XLA select beats a
        # pallas_call launch.
        out = jnp.where(flags[:, None, None, None], jnp.flip(data, axis=-1), data)
    else:
        out2 = _hflip_pallas_jit(data.reshape(N, L), flags.astype(jnp.int32),
                                 width=W)
        out = out2.reshape(N, C, H, W)
    return out[0] if squeeze else out


if __name__ == "__main__":
    key = jax.random.PRNGKey(0)
    k_data, k_flip = jax.random.split(key)

    # batch=2, channels=4 (3 RGB + 1 extra 'ig' channel for 'proposed'), 16x16.
    data = jax.random.normal(k_data, (2, 4, 16, 16), dtype=jnp.float32)

    # min_pallas_bytes=0 forces the Pallas path even at this tiny test size.
    out = cifar_random_horizontal_flip(data, k_flip, p=0.5, usage="proposed",
                                       min_pallas_bytes=0)
    out = jax.block_until_ready(out)

    # Pure-JAX reference with identical per-sample flip decisions.
    flags = jax.random.uniform(k_flip, (2,)) < 0.5
    expected = jnp.where(flags[:, None, None, None], jnp.flip(data, axis=-1), data)
    assert out.shape == data.shape and out.dtype == data.dtype
    assert jnp.allclose(out, expected), "mismatch vs reference random hflip"

    # Single-image path (original module signature), p=1 -> always flip.
    img = data[0]
    out1 = jax.block_until_ready(
        cifar_random_horizontal_flip(img, k_flip, p=1.0, min_pallas_bytes=0))
    assert jnp.allclose(out1, jnp.flip(img, axis=-1)), "mismatch vs forced hflip"

    # Small-input fallback path (pure XLA) also matches.
    out_fb = jax.block_until_ready(
        cifar_random_horizontal_flip(data, k_flip, p=0.5))
    assert jnp.allclose(out_fb, expected), "fallback path mismatch"

    print("KERNEL_OK")
</pallas_src>

<mosaic_0001>
module attributes {stable_mosaic.version = 11 : i64} {
  func.func @kernel(%arg0: i32, %arg1: memref<8x1xi32, #tpu.memory_space<vmem>>, %arg2: memref<8x1024xf32, #tpu.memory_space<vmem>>, %arg3: memref<8x1024xf32, #tpu.memory_space<vmem>>) attributes {dimension_semantics = [#tpu.dimension_semantics<parallel>], iteration_bounds = array<i64: 1>, scalar_prefetch = 0 : i64, scratch_operands = 0 : i64, tpu.core_type = #tpu.core_type<tc>, window_params = [{transform_indices = @transform_0, window_bounds = array<i64: 8, 1>}, {transform_indices = @transform_1, window_bounds = array<i64: 8, 1024>}, {transform_indices = @transform_2, window_bounds = array<i64: 8, 1024>}]} {
    %c0 = arith.constant 0 : index
    %c0_0 = arith.constant 0 : index
    %0 = vector.load %arg2[%c0, %c0_0] : memref<8x1024xf32, #tpu.memory_space<vmem>>, vector<8x1024xf32>
    %1 = tpu.iota {dimensions = array<i32: 1>} : vector<8x1024xi32>
    %c1023_i32 = arith.constant 1023 : i32
    %2 = tpu.dynamic_rotate %0 by %c1023_i32 dim 1 : vector<8x1024xf32>, i32 -> vector<8x1024xf32>
    %c1_i32 = arith.constant 1 : i32
    %3 = tpu.dynamic_rotate %0 by %c1_i32 dim 1 : vector<8x1024xf32>, i32 -> vector<8x1024xf32>
    %c1_i32_1 = arith.constant 1 : i32
    %4 = vector.broadcast %c1_i32_1 : i32 to vector<8x1024xi32>
    %5 = arith.andi %1, %4 : vector<8x1024xi32>
    %c0_i32 = arith.constant 0 : i32
    %6 = vector.broadcast %c0_i32 : i32 to vector<8x1024xi32>
    %7 = arith.cmpi eq, %5, %6 : vector<8x1024xi32>
    %8 = arith.select %7, %2, %3 : vector<8x1024xi1>, vector<8x1024xf32>
    %c1022_i32 = arith.constant 1022 : i32
    %9 = tpu.dynamic_rotate %8 by %c1022_i32 dim 1 : vector<8x1024xf32>, i32 -> vector<8x1024xf32>
    %c2_i32 = arith.constant 2 : i32
    %10 = tpu.dynamic_rotate %8 by %c2_i32 dim 1 : vector<8x1024xf32>, i32 -> vector<8x1024xf32>
    %c2_i32_2 = arith.constant 2 : i32
    %11 = vector.broadcast %c2_i32_2 : i32 to vector<8x1024xi32>
    %12 = arith.andi %1, %11 : vector<8x1024xi32>
    %c0_i32_3 = arith.constant 0 : i32
    %13 = vector.broadcast %c0_i32_3 : i32 to vector<8x1024xi32>
    %14 = arith.cmpi eq, %12, %13 : vector<8x1024xi32>
    %15 = arith.select %14, %9, %10 : vector<8x1024xi1>, vector<8x1024xf32>
    %c1020_i32 = arith.constant 1020 : i32
    %16 = tpu.dynamic_rotate %15 by %c1020_i32 dim 1 : vector<8x1024xf32>, i32 -> vector<8x1024xf32>
    %c4_i32 = arith.constant 4 : i32
    %17 = tpu.dynamic_rotate %15 by %c4_i32 dim 1 : vector<8x1024xf32>, i32 -> vector<8x1024xf32>
    %c4_i32_4 = arith.constant 4 : i32
    %18 = vector.broadcast %c4_i32_4 : i32 to vector<8x1024xi32>
    %19 = arith.andi %1, %18 : vector<8x1024xi32>
    %c0_i32_5 = arith.constant 0 : i32
    %20 = vector.broadcast %c0_i32_5 : i32 to vector<8x1024xi32>
    %21 = arith.cmpi eq, %19, %20 : vector<8x1024xi32>
    %22 = arith.select %21, %16, %17 : vector<8x1024xi1>, vector<8x1024xf32>
    %c1016_i32 = arith.constant 1016 : i32
    %23 = tpu.dynamic_rotate %22 by %c1016_i32 dim 1 : vector<8x1024xf32>, i32 -> vector<8x1024xf32>
    %c8_i32 = arith.constant 8 : i32
    %24 = tpu.dynamic_rotate %22 by %c8_i32 dim 1 : vector<8x1024xf32>, i32 -> vector<8x1024xf32>
    %c8_i32_6 = arith.constant 8 : i32
    %25 = vector.broadcast %c8_i32_6 : i32 to vector<8x1024xi32>
    %26 = arith.andi %1, %25 : vector<8x1024xi32>
    %c0_i32_7 = arith.constant 0 : i32
    %27 = vector.broadcast %c0_i32_7 : i32 to vector<8x1024xi32>
    %28 = arith.cmpi eq, %26, %27 : vector<8x1024xi32>
    %29 = arith.select %28, %23, %24 : vector<8x1024xi1>, vector<8x1024xf32>
    %c0_8 = arith.constant 0 : index
    %c0_9 = arith.constant 0 : index
    %30 = vector.load %arg1[%c0_8, %c0_9] : memref<8x1xi32, #tpu.memory_space<vmem>>, vector<8x1xi32>
    %c0_i32_10 = arith.constant 0 : i32
    %31 = vector.broadcast %c0_i32_10 : i32 to vector<8x1xi32>
    %32 = arith.cmpi ne, %30, %31 : vector<8x1xi32>
    %33 = vector.shape_cast %32 : vector<8x1xi1> to vector<8x1xi1>
    %34 = vector.broadcast %33 : vector<8x1xi1> to vector<8x1024xi1>
    %35 = arith.select %34, %29, %0 : vector<8x1024xi1>, vector<8x1024xf32>
    %c0_11 = arith.constant 0 : index
    %c0_12 = arith.constant 0 : index
    %36 = vector.load %arg3[%c0_11, %c0_12] : memref<8x1024xf32, #tpu.memory_space<vmem>>, vector<8x1024xf32>
    tpu.vector_store %arg3[%c0_11, %c0_12], %35 {strides = array<i32>} : memref<8x1024xf32, #tpu.memory_space<vmem>>, vector<8x1024xf32>,
    return
  }
  func.func @transform_0(%arg0: i32) -> (i32, i32) {
    %c0_i32 = arith.constant 0 : i32
    %c0_i32_0 = arith.constant 0 : i32
    return %arg0, %c0_i32 : i32, i32
  }
  func.func @transform_1(%arg0: i32) -> (i32, i32) {
    %c0_i32 = arith.constant 0 : i32
    %c0_i32_0 = arith.constant 0 : i32
    return %arg0, %c0_i32 : i32, i32
  }
  func.func @transform_2(%arg0: i32) -> (i32, i32) {
    %c0_i32 = arith.constant 0 : i32
    %c0_i32_0 = arith.constant 0 : i32
    return %arg0, %c0_i32 : i32, i32
  }
}

</mosaic_0001>

<llo_original>
// kernel: _hflip_pallas.1
$region0: #{_hflip_pallas.1}
  #allocation0 [shape = 'u32[]', space=smem, size = 0x4, offset = 0x4, fixed_abs, tag = 'smem constant byte address 0x4 - core index']
  #allocation1 [shape = 'u32[144,128]{1,0:T(1,128)}', space=vmem, size = 0x12000, scoped, tag = 'internal scratch']
  %s0 = inlined_call_operand.vmem [shape: s32[8,1], index: 0, kind: input, shape index: {}]
  %s1 = inlined_call_operand.vmem [shape: f32[8,1024], index: 1, kind: input, shape index: {}, may-alias: {1,2}]
  %s2 = inlined_call_operand.vmem [shape: f32[8,1024], index: 2, kind: output, shape index: {}, may-alias: {1,2}]
  %s3 = sld [smem:[#allocation0]]
  $region18: #{_hflip_pallas.1} parent=0
    _
  %s5 = ssub.s32 1, %s3
  %s6 = scalar_select 0, %s5, %s3
  // Predicated region
  $region2: #{_hflip_pallas.1} parent=0 // pred_check
    _
  $region3: #{_hflip_pallas.1} parent=0 // pred_check_branch
    %8 = sbr.rel (0) target = $region5
  $region4: #{_hflip_pallas.1} parent=0 // pred_region
    _
  $region5: #{_hflip_pallas.1} parent=0 // pred_fallthru
    _
  // Predicated region
  $region6: #{_hflip_pallas.1} parent=0 // pred_check
    _
  $region7: #{_hflip_pallas.1} parent=0 // pred_check_branch
    %10 = sbr.rel (0) target = $region9
  $region8: #{_hflip_pallas.1} parent=0 // pred_region
    _
  $region9: #{_hflip_pallas.1} parent=0 // pred_fallthru
    _
  %v11 = vld [vmem:[%s1] sm:$0xff]
  %v12 = vld [vmem:[%s1 + $0x8] sm:$0xff]
  %v13 = vld [vmem:[%s1 + $0x10] sm:$0xff]
  %v14 = vld [vmem:[%s1 + $0x18] sm:$0xff]
  %v15 = vld [vmem:[%s1 + $0x20] sm:$0xff]
  %v16 = vld [vmem:[%s1 + $0x28] sm:$0xff]
  %v17 = vld [vmem:[%s1 + $0x30] sm:$0xff]
  %v18 = vld [vmem:[%s1 + $0x38] sm:$0xff]
  %v19 = vlaneseq
  %v20 = vand.u32 %v19, 127
  %v21 = vadd.s32 %v20, 128
  %v22 = vadd.s32 %v20, 256
  %v23 = vadd.s32 %v20, 384
  %v24 = vadd.s32 %v20, 512
  %v25 = vadd.s32 %v20, 640
  %v26 = vadd.s32 %v20, 768
  %v27 = vadd.s32 %v20, 896
  %28 = vrot.lane.b32.xlu0 %v11, 127
  %v29 = vpop.permute.xlu0 %28
  %30 = vrot.lane.b32.xlu0 %v12, 127
  %v31 = vpop.permute.xlu0 %30
  %32 = vrot.lane.b32.xlu0 %v13, 127
  %v33 = vpop.permute.xlu0 %32
  %34 = vrot.lane.b32.xlu0 %v14, 127
  %v35 = vpop.permute.xlu0 %34
  %36 = vrot.lane.b32.xlu0 %v15, 127
  %v37 = vpop.permute.xlu0 %36
  %38 = vrot.lane.b32.xlu0 %v16, 127
  %v39 = vpop.permute.xlu0 %38
  %40 = vrot.lane.b32.xlu0 %v17, 127
  %v41 = vpop.permute.xlu0 %40
  %42 = vrot.lane.b32.xlu0 %v18, 127
  %v43 = vpop.permute.xlu0 %42
  %vm44 = vcmp.lt.s32.totalorder %v20, 127
  %v45 = vsel %vm44, %v41, %v43
  %v46 = vsel %vm44, %v39, %v41
  %v47 = vsel %vm44, %v37, %v39
  %v48 = vsel %vm44, %v35, %v37
  %v49 = vsel %vm44, %v33, %v35
  %v50 = vsel %vm44, %v31, %v33
  %v51 = vsel %vm44, %v29, %v31
  %v52 = vsel %vm44, %v43, %v29
  %53 = vrot.lane.b32.xlu0 %v11, 1
  %v54 = vpop.permute.xlu0 %53
  %55 = vrot.lane.b32.xlu0 %v12, 1
  %v56 = vpop.permute.xlu0 %55
  %57 = vrot.lane.b32.xlu0 %v13, 1
  %v58 = vpop.permute.xlu0 %57
  %59 = vrot.lane.b32.xlu0 %v14, 1
  %v60 = vpop.permute.xlu0 %59
  %61 = vrot.lane.b32.xlu0 %v15, 1
  %v62 = vpop.permute.xlu0 %61
  %63 = vrot.lane.b32.xlu0 %v16, 1
  %v64 = vpop.permute.xlu0 %63
  %65 = vrot.lane.b32.xlu0 %v17, 1
  %v66 = vpop.permute.xlu0 %65
  %67 = vrot.lane.b32.xlu0 %v18, 1
  %v68 = vpop.permute.xlu0 %67
  %vm69 = vcmp.lt.s32.totalorder %v20, 1
  %v70 = vsel %vm69, %v66, %v68
  %v71 = vsel %vm69, %v64, %v66
  %v72 = vsel %vm69, %v62, %v64
  %v73 = vsel %vm69, %v60, %v62
  %v74 = vsel %vm69, %v58, %v60
  %v75 = vsel %vm69, %v56, %v58
  %v76 = vsel %vm69, %v54, %v56
  %v77 = vsel %vm69, %v68, %v54
  %v78 = vand.u32 %v20, 1
  %v79 = vand.u32 %v21, 1
  %v80 = vand.u32 %v22, 1
  %v81 = vand.u32 %v23, 1
  %v82 = vand.u32 %v24, 1
  %v83 = vand.u32 %v25, 1
  %v84 = vand.u32 %v26, 1
  %v85 = vand.u32 %v27, 1
  %vm86 = vcmp.eq.s32.totalorder %v78, 0
  %vm87 = vcmp.eq.s32.totalorder %v79, 0
  %vm88 = vcmp.eq.s32.totalorder %v80, 0
  %vm89 = vcmp.eq.s32.totalorder %v81, 0
  %vm90 = vcmp.eq.s32.totalorder %v82, 0
  %vm91 = vcmp.eq.s32.totalorder %v83, 0
  %vm92 = vcmp.eq.s32.totalorder %v84, 0
  %vm93 = vcmp.eq.s32.totalorder %v85, 0
  %v94 = vsel %vm86, %v51, %v77
  %v95 = vsel %vm87, %v50, %v76
  %v96 = vsel %vm88, %v49, %v75
  %v97 = vsel %vm89, %v48, %v74
  %v98 = vsel %vm90, %v47, %v73
  %v99 = vsel %vm91, %v46, %v72
  %v100 = vsel %vm92, %v45, %v71
  %v101 = vsel %vm93, %v52, %v70
  %102 = vrot.lane.b32.xlu0 %v94, 126
  %v103 = vpop.permute.xlu0 %102
  %104 = vrot.lane.b32.xlu0 %v95, 126
  %v105 = vpop.permute.xlu0 %104
  %106 = vrot.lane.b32.xlu0 %v96, 126
  %v107 = vpop.permute.xlu0 %106
  %108 = vrot.lane.b32.xlu0 %v97, 126
  %v109 = vpop.permute.xlu0 %108
  %110 = vrot.lane.b32.xlu0 %v98, 126
  %v111 = vpop.permute.xlu0 %110
  %112 = vrot.lane.b32.xlu0 %v99, 126
  %v113 = vpop.permute.xlu0 %112
  %114 = vrot.lane.b32.xlu0 %v100, 126
  %v115 = vpop.permute.xlu0 %114
  %116 = vrot.lane.b32.xlu0 %v101, 126
  %v117 = vpop.permute.xlu0 %116
  %vm118 = vcmp.lt.s32.totalorder %v20, 126
  %v119 = vsel %vm118, %v115, %v117
  %v120 = vsel %vm118, %v113, %v115
  %v121 = vsel %vm118, %v111, %v113
  %v122 = vsel %vm118, %v109, %v111
  %v123 = vsel %vm118, %v107, %v109
  %v124 = vsel %vm118, %v105, %v107
  %v125 = vsel %vm118, %v103, %v105
  %v126 = vsel %vm118, %v117, %v103
  %127 = vrot.lane.b32.xlu0 %v94, 2
  %v128 = vpop.permute.xlu0 %127
  %129 = vrot.lane.b32.xlu0 %v95, 2
  %v130 = vpop.permute.xlu0 %129
  %131 = vrot.lane.b32.xlu0 %v96, 2
  %v132 = vpop.permute.xlu0 %131
  %133 = vrot.lane.b32.xlu0 %v97, 2
  %v134 = vpop.permute.xlu0 %133
  %135 = vrot.lane.b32.xlu0 %v98, 2
  %v136 = vpop.permute.xlu0 %135
  %137 = vrot.lane.b32.xlu0 %v99, 2
  %v138 = vpop.permute.xlu0 %137
  %139 = vrot.lane.b32.xlu0 %v100, 2
  %v140 = vpop.permute.xlu0 %139
  %141 = vrot.lane.b32.xlu0 %v101, 2
  %v142 = vpop.permute.xlu0 %141
  %vm143 = vcmp.lt.s32.totalorder %v20, 2
  %v144 = vsel %vm143, %v140, %v142
  %v145 = vsel %vm143, %v138, %v140
  %v146 = vsel %vm143, %v136, %v138
  %v147 = vsel %vm143, %v134, %v136
  %v148 = vsel %vm143, %v132, %v134
  %v149 = vsel %vm143, %v130, %v132
  %v150 = vsel %vm143, %v128, %v130
  %v151 = vsel %vm143, %v142, %v128
  %v152 = vand.u32 %v20, 2
  %v153 = vand.u32 %v21, 2
  %v154 = vand.u32 %v22, 2
  %v155 = vand.u32 %v23, 2
  %v156 = vand.u32 %v24, 2
  %v157 = vand.u32 %v25, 2
  %v158 = vand.u32 %v26, 2
  %v159 = vand.u32 %v27, 2
  %vm160 = vcmp.eq.s32.totalorder %v152, 0
  %vm161 = vcmp.eq.s32.totalorder %v153, 0
  %vm162 = vcmp.eq.s32.totalorder %v154, 0
  %vm163 = vcmp.eq.s32.totalorder %v155, 0
  %vm164 = vcmp.eq.s32.totalorder %v156, 0
  %vm165 = vcmp.eq.s32.totalorder %v157, 0
  %vm166 = vcmp.eq.s32.totalorder %v158, 0
  %vm167 = vcmp.eq.s32.totalorder %v159, 0
  %v168 = vsel %vm160, %v125, %v151
  %v169 = vsel %vm161, %v124, %v150
  %v170 = vsel %vm162, %v123, %v149
  %v171 = vsel %vm163, %v122, %v148
  %v172 = vsel %vm164, %v121, %v147
  %v173 = vsel %vm165, %v120, %v146
  %v174 = vsel %vm166, %v119, %v145
  %v175 = vsel %vm167, %v126, %v144
  %176 = vrot.lane.b32.xlu0 %v168, 124
  %v177 = vpop.permute.xlu0 %176
  %178 = vrot.lane.b32.xlu0 %v169, 124
  %v179 = vpop.permute.xlu0 %178
  %180 = vrot.lane.b32.xlu0 %v170, 124
  %v181 = vpop.permute.xlu0 %180
  %182 = vrot.lane.b32.xlu0 %v171, 124
  %v183 = vpop.permute.xlu0 %182
  %184 = vrot.lane.b32.xlu0 %v172, 124
  %v185 = vpop.permute.xlu0 %184
  %186 = vrot.lane.b32.xlu0 %v173, 124
  %v187 = vpop.permute.xlu0 %186
  %188 = vrot.lane.b32.xlu0 %v174, 124
  %v189 = vpop.permute.xlu0 %188
  %190 = vrot.lane.b32.xlu0 %v175, 124
  %v191 = vpop.permute.xlu0 %190
  %vm192 = vcmp.lt.s32.totalorder %v20, 124
  %v193 = vsel %vm192, %v189, %v191
  %v194 = vsel %vm192, %v187, %v189
  %v195 = vsel %vm192, %v185, %v187
  %v196 = vsel %vm192, %v183, %v185
  %v197 = vsel %vm192, %v181, %v183
  %v198 = vsel %vm192, %v179, %v181
  %v199 = vsel %vm192, %v177, %v179
  %v200 = vsel %vm192, %v191, %v177
  %201 = vrot.lane.b32.xlu0 %v168, 4
  %v202 = vpop.permute.xlu0 %201
  %203 = vrot.lane.b32.xlu0 %v169, 4
  %v204 = vpop.permute.xlu0 %203
  %205 = vrot.lane.b32.xlu0 %v170, 4
  %v206 = vpop.permute.xlu0 %205
  %207 = vrot.lane.b32.xlu0 %v171, 4
  %v208 = vpop.permute.xlu0 %207
  %209 = vrot.lane.b32.xlu0 %v172, 4
  %v210 = vpop.permute.xlu0 %209
  %211 = vrot.lane.b32.xlu0 %v173, 4
  %v212 = vpop.permute.xlu0 %211
  %213 = vrot.lane.b32.xlu0 %v174, 4
  %v214 = vpop.permute.xlu0 %213
  %215 = vrot.lane.b32.xlu0 %v175, 4
  %v216 = vpop.permute.xlu0 %215
  %vm217 = vcmp.lt.s32.totalorder %v20, 4
  %v218 = vsel %vm217, %v214, %v216
  %v219 = vsel %vm217, %v212, %v214
  %v220 = vsel %vm217, %v210, %v212
  %v221 = vsel %vm217, %v208, %v210
  %v222 = vsel %vm217, %v206, %v208
  %v223 = vsel %vm217, %v204, %v206
  %v224 = vsel %vm217, %v202, %v204
  %v225 = vsel %vm217, %v216, %v202
  %v226 = vand.u32 %v20, 4
  %v227 = vand.u32 %v21, 4
  %v228 = vand.u32 %v22, 4
  %v229 = vand.u32 %v23, 4
  %v230 = vand.u32 %v24, 4
  %v231 = vand.u32 %v25, 4
  %v232 = vand.u32 %v26, 4
  %v233 = vand.u32 %v27, 4
  %vm234 = vcmp.eq.s32.totalorder %v226, 0
  %vm235 = vcmp.eq.s32.totalorder %v227, 0
  %vm236 = vcmp.eq.s32.totalorder %v228, 0
  %vm237 = vcmp.eq.s32.totalorder %v229, 0
  %vm238 = vcmp.eq.s32.totalorder %v230, 0
  %vm239 = vcmp.eq.s32.totalorder %v231, 0
  %vm240 = vcmp.eq.s32.totalorder %v232, 0
  %vm241 = vcmp.eq.s32.totalorder %v233, 0
  %v242 = vsel %vm234, %v199, %v225
  %v243 = vsel %vm235, %v198, %v224
  %v244 = vsel %vm236, %v197, %v223
  %v245 = vsel %vm237, %v196, %v222
  %v246 = vsel %vm238, %v195, %v221
  %v247 = vsel %vm239, %v194, %v220
  %v248 = vsel %vm240, %v193, %v219
  %v249 = vsel %vm241, %v200, %v218
  %250 = vrot.lane.b32.xlu0 %v242, 120
  %v251 = vpop.permute.xlu0 %250
  %252 = vrot.lane.b32.xlu0 %v243, 120
  %v253 = vpop.permute.xlu0 %252
  %254 = vrot.lane.b32.xlu0 %v244, 120
  %v255 = vpop.permute.xlu0 %254
  %256 = vrot.lane.b32.xlu0 %v245, 120
  %v257 = vpop.permute.xlu0 %256
  %258 = vrot.lane.b32.xlu0 %v246, 120
  %v259 = vpop.permute.xlu0 %258
  %260 = vrot.lane.b32.xlu0 %v247, 120
  %v261 = vpop.permute.xlu0 %260
  %262 = vrot.lane.b32.xlu0 %v248, 120
  %v263 = vpop.permute.xlu0 %262
  %264 = vrot.lane.b32.xlu0 %v249, 120
  %v265 = vpop.permute.xlu0 %264
  %vm266 = vcmp.lt.s32.totalorder %v20, 120
  %v267 = vsel %vm266, %v263, %v265
  %v268 = vsel %vm266, %v261, %v263
  %v269 = vsel %vm266, %v259, %v261
  %v270 = vsel %vm266, %v257, %v259
  %v271 = vsel %vm266, %v255, %v257
  %v272 = vsel %vm266, %v253, %v255
  %v273 = vsel %vm266, %v251, %v253
  %v274 = vsel %vm266, %v265, %v251
  %275 = vrot.lane.b32.xlu0 %v242, 8
  %v276 = vpop.permute.xlu0 %275
  %277 = vrot.lane.b32.xlu0 %v243, 8
  %v278 = vpop.permute.xlu0 %277
  %279 = vrot.lane.b32.xlu0 %v244, 8
  %v280 = vpop.permute.xlu0 %279
  %281 = vrot.lane.b32.xlu0 %v245, 8
  %v282 = vpop.permute.xlu0 %281
  %283 = vrot.lane.b32.xlu0 %v246, 8
  %v284 = vpop.permute.xlu0 %283
  %285 = vrot.lane.b32.xlu0 %v247, 8
  %v286 = vpop.permute.xlu0 %285
  %287 = vrot.lane.b32.xlu0 %v248, 8
  %v288 = vpop.permute.xlu0 %287
  %289 = vrot.lane.b32.xlu0 %v249, 8
  %v290 = vpop.permute.xlu0 %289
  %vm291 = vcmp.lt.s32.totalorder %v20, 8
  %v292 = vsel %vm291, %v288, %v290
  %v293 = vsel %vm291, %v286, %v288
  %v294 = vsel %vm291, %v284, %v286
  %v295 = vsel %vm291, %v282, %v284
  %v296 = vsel %vm291, %v280, %v282
  %v297 = vsel %vm291, %v278, %v280
  %v298 = vsel %vm291, %v276, %v278
  %v299 = vsel %vm291, %v290, %v276
  %v300 = vand.u32 %v20, 8
  %v301 = vand.u32 %v21, 8
  %v302 = vand.u32 %v22, 8
  %v303 = vand.u32 %v23, 8
  %v304 = vand.u32 %v24, 8
  %v305 = vand.u32 %v25, 8
  %v306 = vand.u32 %v26, 8
  %v307 = vand.u32 %v27, 8
  %vm308 = vcmp.eq.s32.totalorder %v300, 0
  %vm309 = vcmp.eq.s32.totalorder %v301, 0
  %vm310 = vcmp.eq.s32.totalorder %v302, 0
  %vm311 = vcmp.eq.s32.totalorder %v303, 0
  %vm312 = vcmp.eq.s32.totalorder %v304, 0
  %vm313 = vcmp.eq.s32.totalorder %v305, 0
  %vm314 = vcmp.eq.s32.totalorder %v306, 0
  %vm315 = vcmp.eq.s32.totalorder %v307, 0
  %v316 = vsel %vm308, %v273, %v299
  %v317 = vsel %vm309, %v272, %v298
  %v318 = vsel %vm310, %v271, %v297
  %v319 = vsel %vm311, %v270, %v296
  %v320 = vsel %vm312, %v269, %v295
  %v321 = vsel %vm313, %v268, %v294
  %v322 = vsel %vm314, %v267, %v293
  %v323 = vsel %vm315, %v274, %v292
  %v324 = vld [vmem:[%s0] sm:$0xff]
  %vm325 = vcmp.ne.s32.totalorder %v324, 0
  %v326 = vsel %vm325, 1, 0
  %327 = vset.pattern.permute.xlu0 0
  %328 = vperm.xlu0 %327, %v326
  %v329 = vpop.permute.xlu0 %328
  %vm330 = vcmp.eq.s32.totalorder %v329, 1
  %v331 = vsel %vm330, %v316, %v11
  %v332 = vsel %vm330, %v317, %v12
  %v333 = vsel %vm330, %v318, %v13
  %v334 = vsel %vm330, %v319, %v14
  %v335 = vsel %vm330, %v320, %v15
  %v336 = vsel %vm330, %v321, %v16
  %v337 = vsel %vm330, %v322, %v17
  %v338 = vsel %vm330, %v323, %v18
  %339 = vst [vmem:[%s2] sm:$0xff] %v331
  %340 = vst [vmem:[%s2 + $0x8] sm:$0xff] %v332
  %341 = vst [vmem:[%s2 + $0x10] sm:$0xff] %v333
  %342 = vst [vmem:[%s2 + $0x18] sm:$0xff] %v334
  %343 = vst [vmem:[%s2 + $0x20] sm:$0xff] %v335
  %344 = vst [vmem:[%s2 + $0x28] sm:$0xff] %v336
  %345 = vst [vmem:[%s2 + $0x30] sm:$0xff] %v337
  %346 = vst [vmem:[%s2 + $0x38] sm:$0xff] %v338
  // Predicated region
  $region10: #{_hflip_pallas.1} parent=0 // pred_check
    _
  $region11: #{_hflip_pallas.1} parent=0 // pred_check_branch
    %348 = sbr.rel (0) target = $region13
  $region12: #{_hflip_pallas.1} parent=0 // pred_region
    _
  $region13: #{_hflip_pallas.1} parent=0 // pred_fallthru
    _
  // Predicated region
  $region14: #{_hflip_pallas.1} parent=0 // pred_check
    _
  $region15: #{_hflip_pallas.1} parent=0 // pred_check_branch
    %350 = sbr.rel (0) target = $region17
  $region16: #{_hflip_pallas.1} parent=0 // pred_region
    _
  $region17: #{_hflip_pallas.1} parent=0 // pred_fallthru
    _

</llo_original>
